<compile_context>
chip_gen: v5e
topology: v5e:2x2
jax: 0.10.0
libtpu: 0.0.40
codegen_flags: <defaults>
</compile_context>

<pallas_src>
import functools

import jax
import jax.numpy as jnp
from jax import lax
from jax.experimental import pallas as pl
from jax.experimental.pallas import tpu as pltpu


# ------------------------------------------------------------------ tiling ---

_LANE = 128

# Below this channel count, channels_last routes through the dense
# sublane-reduce kernel (one XLA transpose each way) instead of lane-sparse
# tiles.  Review puts the break-even near C ~= 8-16.
_MIN_LANE_C = 8

# Assumed number of live full-size f32 temporaries inside the kernel body
# (x_f32, x*x / centered x, pre-cast result) for the VMEM live-bytes model.
_F32_TEMPS = 3


def _cdiv(a, b):
    return (a + b - 1) // b


def _round_up(a, m):
    return _cdiv(a, m) * m


@functools.lru_cache(maxsize=None)
def _chip():
    """Lazy per-chip sizing: (vmem_capacity, tensorcores, scoped_vmem_limit)."""
    try:
        cap = int(pltpu.get_tpu_info().vmem_capacity_bytes)
    except Exception:
        cap = 64 * 1024 * 1024  # conservative (v7x-sized) fallback
    cap = min(max(cap, 32 * 1024 * 1024), 256 * 1024 * 1024)
    # Heuristic: the 64 MiB-per-TensorCore generation (v7x) has 2 TCs/chip;
    # the 128 MiB chips (v5e/v6e) have 1.
    cores = 2 if cap <= 64 * 1024 * 1024 else 1
    # Scoped-VMEM limit: default is 32 MiB on v7x and 16/32 MiB on v5e/v6e,
    # so raise it -- 3/4 of capacity on the 64 MiB chip (headroom for Mosaic
    # internal scratch), 1/2 on the 128 MiB chips.
    vmem_limit = (cap * 3) // 4 if cap <= 64 * 1024 * 1024 else cap // 2
    return cap, cores, vmem_limit


def _row_grain(dtype):
    """Sublane-packing granularity for the second-minor block dimension."""
    itemsize = jnp.dtype(dtype).itemsize
    if itemsize >= 4:
        return 8
    if itemsize == 2:
        return 16
    return 32


def _pick_tile(total, bytes_per_unit, grain, budget, min_steps):
    """Largest grain-aligned tile of the blocked dim whose live VMEM bytes
    (double-buffered in/out + f32 temporaries, already folded into
    `bytes_per_unit`) fit `budget`, additionally split into >= `min_steps`
    grid steps when the extent allows (multi-TensorCore chips).  Ragged last
    blocks are handled by Pallas (masked writes) instead of padding in HBM.
    """
    tile = max((budget // max(bytes_per_unit, 1)) // grain * grain, grain)
    if min_steps > 1 and total >= min_steps * grain:
        tile = min(tile, _round_up(_cdiv(total, min_steps), grain))
    if total <= tile:
        return total  # single full-extent block: always layout-legal
    return tile


def _compiler_params(n_grid_dims, vmem_limit):
    return pltpu.CompilerParams(
        dimension_semantics=("parallel",) * n_grid_dims,
        vmem_limit_bytes=int(vmem_limit),
    )


def _cost(n_groups, c, itemsize):
    # ~7 VPU ops per element, one rsqrt per normalized group, 1 read + 1 write.
    return pl.CostEstimate(
        flops=int(7 * n_groups * c),
        transcendentals=int(n_groups),
        bytes_accessed=int(2 * n_groups * c * itemsize),
    )


# ----------------------------------------------------------------- kernels ---

def _ln_lane_kernel(x_ref, w_ref, b_ref, o_ref, *, eps):
    """Normalize over the last (lane) axis.  x: (TM, C), w/b: (1, C)."""
    x = x_ref[...].astype(jnp.float32)
    mean = jnp.mean(x, axis=-1, keepdims=True)
    msq = jnp.mean(x * x, axis=-1, keepdims=True)
    var = jnp.maximum(msq - mean * mean, 0.0)          # one-pass, biased
    inv = lax.rsqrt(var + eps)
    w = w_ref[...].astype(jnp.float32)
    b = b_ref[...].astype(jnp.float32)
    o_ref[...] = ((x - mean) * inv * w + b).astype(o_ref.dtype)


def _ln_sublane_kernel(x_ref, w_ref, b_ref, o_ref, *, eps):
    """Normalize over the channel (sublane) axis.  x: (1, C, TL), w/b: (1, C, 1)."""
    x = x_ref[0].astype(jnp.float32)                   # (C, TL)
    mean = jnp.mean(x, axis=0, keepdims=True)          # (1, TL)
    msq = jnp.mean(x * x, axis=0, keepdims=True)
    var = jnp.maximum(msq - mean * mean, 0.0)          # one-pass, biased
    inv = lax.rsqrt(var + eps)
    w = w_ref[0].astype(jnp.float32)                   # (C, 1) broadcast over lanes
    b = b_ref[0].astype(jnp.float32)
    o_ref[0] = ((x - mean) * inv * w + b).astype(o_ref.dtype)


# ---------------------------------------------------------------- wrappers ---

def _layernorm_lane(x2d, weight, bias, eps):
    """x2d: (rows, C), normalize each row over C (lane reduce)."""
    rows, c = x2d.shape
    itemsize = jnp.dtype(x2d.dtype).itemsize
    _, cores, vmem_limit = _chip()
    budget = (vmem_limit * 3) // 4                     # headroom under scoped limit
    c_lane = _round_up(c, _LANE)                       # lane dim pads to 128 in VMEM
    # live bytes per row: 2x double-buffered in + out (input dtype, padded)
    # plus ~_F32_TEMPS full-tile f32 temporaries.
    bytes_per_row = 4 * c_lane * itemsize + _F32_TEMPS * c_lane * 4
    min_steps = 2 * cores if cores > 1 else 1
    tm = _pick_tile(rows, bytes_per_row, _row_grain(x2d.dtype), budget, min_steps)
    grid = (_cdiv(rows, tm),)
    w2 = weight.reshape(1, c).astype(jnp.float32)
    b2 = bias.reshape(1, c).astype(jnp.float32)
    return pl.pallas_call(
        functools.partial(_ln_lane_kernel, eps=eps),
        out_shape=jax.ShapeDtypeStruct((rows, c), x2d.dtype),
        grid_spec=pltpu.PrefetchScalarGridSpec(
            num_scalar_prefetch=0,
            grid=grid,
            in_specs=[
                pl.BlockSpec((tm, c), lambda i: (i, 0)),
                pl.BlockSpec((1, c), lambda i: (0, 0)),
                pl.BlockSpec((1, c), lambda i: (0, 0)),
            ],
            out_specs=pl.BlockSpec((tm, c), lambda i: (i, 0)),
        ),
        compiler_params=_compiler_params(1, vmem_limit),
        cost_estimate=_cost(rows, c, itemsize),
    )(x2d, w2, b2)


def _layernorm_sublane(x3, weight, bias, eps):
    """x3: (N, C, S), normalize over C for every (n, s) position (sublane reduce)."""
    n, c, s = x3.shape
    itemsize = jnp.dtype(x3.dtype).itemsize
    _, cores, vmem_limit = _chip()
    budget = (vmem_limit * 3) // 4
    c_sub_in = _round_up(c, _row_grain(x3.dtype))      # sublane pad, input dtype
    c_sub_f32 = _round_up(c, 8)                        # sublane pad, f32 temps
    # live bytes per lane column of the tile (see _layernorm_lane).
    bytes_per_lane = 4 * c_sub_in * itemsize + _F32_TEMPS * c_sub_f32 * 4
    # the batch axis N already contributes parallel grid steps on v7x.
    min_steps = _cdiv(2 * cores, max(n, 1)) if cores > 1 else 1
    tl = _pick_tile(s, bytes_per_lane, _LANE, budget, min_steps)
    grid = (n, _cdiv(s, tl))
    w3 = weight.reshape(1, c, 1).astype(jnp.float32)
    b3 = bias.reshape(1, c, 1).astype(jnp.float32)
    return pl.pallas_call(
        functools.partial(_ln_sublane_kernel, eps=eps),
        out_shape=jax.ShapeDtypeStruct((n, c, s), x3.dtype),
        grid_spec=pltpu.PrefetchScalarGridSpec(
            num_scalar_prefetch=0,
            grid=grid,
            in_specs=[
                pl.BlockSpec((1, c, tl), lambda i, j: (i, 0, j)),
                pl.BlockSpec((1, c, 1), lambda i, j: (0, 0, 0)),
                pl.BlockSpec((1, c, 1), lambda i, j: (0, 0, 0)),
            ],
            out_specs=pl.BlockSpec((1, c, tl), lambda i, j: (i, 0, j)),
        ),
        compiler_params=_compiler_params(2, vmem_limit),
        cost_estimate=_cost(n * s, c, itemsize),
    )(x3, w3, b3)


class LayerNorm:
    """JAX/Pallas port of the PyTorch LayerNorm module (InfiNet.py)."""

    def __init__(self, normalized_shape, eps=1e-6, data_format="channels_last"):
        if data_format not in ("channels_last", "channels_first"):
            raise NotImplementedError
        self.normalized_shape = int(normalized_shape)
        self.eps = float(eps)
        self.data_format = data_format
        # deterministic init, matching nn.Parameter(torch.ones/zeros)
        self.weight = jnp.ones((self.normalized_shape,), dtype=jnp.float32)
        self.bias = jnp.zeros((self.normalized_shape,), dtype=jnp.float32)

    def __call__(self, x):
        c = self.normalized_shape
        if self.data_format == "channels_last":
            # x: (..., C) -- normalize over the last axis.
            assert x.shape[-1] == c
            lead = x.shape[:-1]
            x2d = x.reshape(-1, c)
            if c < _MIN_LANE_C:
                # Very small C: lane-sparse (rows, C) tiles waste >= 15/16 of
                # every vector op, so pay one XLA transpose each way and reuse
                # the dense sublane-reduce kernel with rows on the lane axis.
                # (A transpose-free variant packing k=128//C groups per lane
                # row with an in-kernel segmented reduce could remove the 3x
                # HBM traffic here, but C < 8 is rare for this module.)
                x3 = x2d.T.reshape(1, c, -1)
                y3 = _layernorm_sublane(x3, self.weight, self.bias, self.eps)
                y = y3.reshape(c, -1).T
            else:
                y = _layernorm_lane(x2d, self.weight, self.bias, self.eps)
            return y.reshape(*lead, c)
        else:
            # channels_first: x: (B, C, H, W) -- normalize over the channel axis.
            assert x.ndim == 4 and x.shape[1] == c
            b, _, h, w = x.shape
            x3 = x.reshape(b, c, h * w)          # free reshape, no transpose
            y3 = _layernorm_sublane(x3, self.weight, self.bias, self.eps)
            return y3.reshape(b, c, h, w)


# -------------------------------------------------------------- references ---

def _reference_channels_first(x, weight, bias, eps):
    x = x.astype(jnp.float32)
    u = jnp.mean(x, axis=1, keepdims=True)
    s = jnp.mean((x - u) ** 2, axis=1, keepdims=True)
    xn = (x - u) / jnp.sqrt(s + eps)
    return weight[None, :, None, None] * xn + bias[None, :, None, None]


def _reference_channels_last(x, weight, bias, eps):
    x = x.astype(jnp.float32)
    u = jnp.mean(x, axis=-1, keepdims=True)
    s = jnp.mean((x - u) ** 2, axis=-1, keepdims=True)
    xn = (x - u) / jnp.sqrt(s + eps)
    return xn * weight + bias


if __name__ == "__main__":
    key = jax.random.PRNGKey(0)
    k1, k2, k3, k4, k5, k6 = jax.random.split(key, 6)

    B, C, H, W = 2, 4, 16, 16

    # channels_first: (B, C, H, W) like PyTorch NCHW (sublane-reduce kernel).
    x_cf = jax.random.normal(k1, (B, C, H, W), dtype=jnp.float32)
    ln_cf = LayerNorm(C, eps=1e-6, data_format="channels_first")
    ln_cf.weight = jnp.arange(1, C + 1, dtype=jnp.float32) * 0.5
    ln_cf.bias = jnp.arange(C, dtype=jnp.float32) * 0.1
    y_cf = jax.block_until_ready(ln_cf(x_cf))
    ref_cf = _reference_channels_first(x_cf, ln_cf.weight, ln_cf.bias, ln_cf.eps)
    assert jnp.allclose(y_cf, ref_cf, atol=1e-4, rtol=1e-5), "channels_first mismatch"

    # channels_last with a typical channel count (lane-reduce kernel).
    CL = 32
    x_cl = jax.random.normal(k2, (B, H, W, CL), dtype=jnp.float32)
    ln_cl = LayerNorm(CL, eps=1e-6, data_format="channels_last")
    ln_cl.weight = jnp.arange(1, CL + 1, dtype=jnp.float32) * 0.25
    ln_cl.bias = jnp.arange(CL, dtype=jnp.float32) * -0.05
    y_cl = jax.block_until_ready(ln_cl(x_cl))
    ref_cl = _reference_channels_last(x_cl, ln_cl.weight, ln_cl.bias, ln_cl.eps)
    assert jnp.allclose(y_cl, ref_cl, atol=1e-4, rtol=1e-5), "channels_last mismatch"

    # channels_last with tiny C (< 8) exercises the transpose + sublane fallback.
    x_tiny = jax.random.normal(k3, (B, H, W, C), dtype=jnp.float32)
    ln_tiny = LayerNorm(C, eps=1e-6, data_format="channels_last")
    y_tiny = jax.block_until_ready(ln_tiny(x_tiny))
    ref_tiny = _reference_channels_last(x_tiny, ln_tiny.weight, ln_tiny.bias, 1e-6)
    assert jnp.allclose(y_tiny, ref_tiny, atol=1e-4, rtol=1e-5), "tiny-C channels_last mismatch"

    # Ragged row count (not a tile multiple) for the lane kernel's masked blocks.
    x_rag_cl = jax.random.normal(k4, (3, 5, 7, 64), dtype=jnp.float32)
    ln_rag_cl = LayerNorm(64, eps=1e-6, data_format="channels_last")
    y_rag_cl = jax.block_until_ready(ln_rag_cl(x_rag_cl))
    ref_rag_cl = _reference_channels_last(x_rag_cl, ln_rag_cl.weight, ln_rag_cl.bias, 1e-6)
    assert jnp.allclose(y_rag_cl, ref_rag_cl, atol=1e-4, rtol=1e-5), "ragged channels_last mismatch"

    # Ragged spatial extent (not a multiple of 128) for the sublane kernel.
    x_rag_cf = jax.random.normal(k5, (2, 5, 20, 26), dtype=jnp.float32)
    ln_rag_cf = LayerNorm(5, eps=1e-6, data_format="channels_first")
    y_rag_cf = jax.block_until_ready(ln_rag_cf(x_rag_cf))
    ref_rag_cf = _reference_channels_first(x_rag_cf, ln_rag_cf.weight, ln_rag_cf.bias, 1e-6)
    assert jnp.allclose(y_rag_cf, ref_rag_cf, atol=1e-4, rtol=1e-5), "ragged channels_first mismatch"

    # bf16 input exercises dtype-preserving I/O (math stays f32 in-kernel).
    x_bf = jax.random.normal(k6, (2, 8, 8, 64), dtype=jnp.bfloat16)
    ln_bf = LayerNorm(64, eps=1e-6, data_format="channels_last")
    y_bf = jax.block_until_ready(ln_bf(x_bf))
    assert y_bf.dtype == jnp.bfloat16
    ref_bf = _reference_channels_last(x_bf, ln_bf.weight, ln_bf.bias, 1e-6)
    assert jnp.allclose(y_bf.astype(jnp.float32), ref_bf, atol=5e-2, rtol=5e-2), "bf16 mismatch"

    print("KERNEL_OK")
</pallas_src>

<mosaic_0001>
module attributes {stable_mosaic.version = 11 : i64} {
  func.func @_ln_sublane_kernel(%arg0: i32, %arg1: i32, %arg2: memref<1x4x128xf32, #tpu.memory_space<vmem>>, %arg3: memref<1x4x1xf32, #tpu.memory_space<vmem>>, %arg4: memref<1x4x1xf32, #tpu.memory_space<vmem>>, %arg5: memref<1x4x128xf32, #tpu.memory_space<vmem>>) attributes {dimension_semantics = [#tpu.dimension_semantics<parallel>, #tpu.dimension_semantics<parallel>], iteration_bounds = array<i64: 2, 2>, scalar_prefetch = 0 : i64, scratch_operands = 0 : i64, tpu.core_type = #tpu.core_type<tc>, window_params = [{transform_indices = @transform_0, window_bounds = array<i64: 1, 4, 128>}, {pipeline_mode = #tpu.pipeline_mode<synchronous>, transform_indices = @transform_1, window_bounds = array<i64: 1, 4, 1>}, {pipeline_mode = #tpu.pipeline_mode<synchronous>, transform_indices = @transform_2, window_bounds = array<i64: 1, 4, 1>}, {transform_indices = @transform_3, window_bounds = array<i64: 1, 4, 128>}]} {
    %c0 = arith.constant 0 : index
    %c0_0 = arith.constant 0 : index
    %c0_1 = arith.constant 0 : index
    %0 = vector.load %arg2[%c0, %c0_0, %c0_1] : memref<1x4x128xf32, #tpu.memory_space<vmem>>, vector<1x4x128xf32>
    %1 = vector.shape_cast %0 : vector<1x4x128xf32> to vector<4x128xf32>
    %cst = arith.constant dense<0.000000e+00> : vector<128xf32>
    %2 = vector.multi_reduction <add>, %1, %cst [0] : vector<4x128xf32> to vector<128xf32>
    %3 = vector.shape_cast %2 : vector<128xf32> to vector<1x128xf32>
    %cst_2 = arith.constant 4.000000e+00 : f32
    %4 = vector.broadcast %cst_2 : f32 to vector<1x128xf32>
    %5 = arith.divf %3, %4 : vector<1x128xf32>
    %6 = arith.mulf %1, %1 : vector<4x128xf32>
    %cst_3 = arith.constant dense<0.000000e+00> : vector<128xf32>
    %7 = vector.multi_reduction <add>, %6, %cst_3 [0] : vector<4x128xf32> to vector<128xf32>
    %8 = vector.shape_cast %7 : vector<128xf32> to vector<1x128xf32>
    %cst_4 = arith.constant 4.000000e+00 : f32
    %9 = vector.broadcast %cst_4 : f32 to vector<1x128xf32>
    %10 = arith.divf %8, %9 : vector<1x128xf32>
    %11 = arith.mulf %5, %5 : vector<1x128xf32>
    %12 = arith.subf %10, %11 : vector<1x128xf32>
    %cst_5 = arith.constant 0.000000e+00 : f32
    %13 = vector.broadcast %cst_5 : f32 to vector<1x128xf32>
    %14 = arith.maximumf %12, %13 : vector<1x128xf32>
    %cst_6 = arith.constant 9.99999997E-7 : f32
    %15 = vector.broadcast %cst_6 : f32 to vector<1x128xf32>
    %16 = arith.addf %14, %15 : vector<1x128xf32>
    %17 = math.rsqrt %16 : vector<1x128xf32>
    %c0_7 = arith.constant 0 : index
    %c0_8 = arith.constant 0 : index
    %c0_9 = arith.constant 0 : index
    %18 = vector.load %arg3[%c0_7, %c0_8, %c0_9] : memref<1x4x1xf32, #tpu.memory_space<vmem>>, vector<1x4x1xf32>
    %19 = vector.shape_cast %18 : vector<1x4x1xf32> to vector<4x1xf32>
    %c0_10 = arith.constant 0 : index
    %c0_11 = arith.constant 0 : index
    %c0_12 = arith.constant 0 : index
    %20 = vector.load %arg4[%c0_10, %c0_11, %c0_12] : memref<1x4x1xf32, #tpu.memory_space<vmem>>, vector<1x4x1xf32>
    %21 = vector.shape_cast %20 : vector<1x4x1xf32> to vector<4x1xf32>
    %22 = vector.broadcast %5 : vector<1x128xf32> to vector<4x128xf32>
    %23 = arith.subf %1, %22 : vector<4x128xf32>
    %24 = vector.broadcast %17 : vector<1x128xf32> to vector<4x128xf32>
    %25 = arith.mulf %23, %24 : vector<4x128xf32>
    %26 = vector.broadcast %19 : vector<4x1xf32> to vector<4x128xf32>
    %27 = arith.mulf %25, %26 : vector<4x128xf32>
    %28 = vector.broadcast %21 : vector<4x1xf32> to vector<4x128xf32>
    %29 = arith.addf %27, %28 : vector<4x128xf32>
    %c0_13 = arith.constant 0 : index
    %c0_14 = arith.constant 0 : index
    %c0_15 = arith.constant 0 : index
    %30 = vector.load %arg5[%c0_13, %c0_14, %c0_15] : memref<1x4x128xf32, #tpu.memory_space<vmem>>, vector<1x4x128xf32>
    %31 = vector.shape_cast %30 : vector<1x4x128xf32> to vector<4x128xf32>
    %32 = vector.shape_cast %29 : vector<4x128xf32> to vector<1x4x128xf32>
    tpu.vector_store %arg5[%c0_13, %c0_14, %c0_15], %32 {strides = array<i32>} : memref<1x4x128xf32, #tpu.memory_space<vmem>>, vector<1x4x128xf32>,
    return
  }
  func.func @transform_0(%arg0: i32, %arg1: i32) -> (i32, i32, i32) {
    %c0_i32 = arith.constant 0 : i32
    %c0_i32_0 = arith.constant 0 : i32
    return %arg0, %c0_i32, %arg1 : i32, i32, i32
  }
  func.func @transform_1(%arg0: i32, %arg1: i32) -> (i32, i32, i32) {
    %c0_i32 = arith.constant 0 : i32
    %c0_i32_0 = arith.constant 0 : i32
    %c0_i32_1 = arith.constant 0 : i32
    %c0_i32_2 = arith.constant 0 : i32
    return %c0_i32, %c0_i32_0, %c0_i32_1 : i32, i32, i32
  }
  func.func @transform_2(%arg0: i32, %arg1: i32) -> (i32, i32, i32) {
    %c0_i32 = arith.constant 0 : i32
    %c0_i32_0 = arith.constant 0 : i32
    %c0_i32_1 = arith.constant 0 : i32
    %c0_i32_2 = arith.constant 0 : i32
    return %c0_i32, %c0_i32_0, %c0_i32_1 : i32, i32, i32
  }
  func.func @transform_3(%arg0: i32, %arg1: i32) -> (i32, i32, i32) {
    %c0_i32 = arith.constant 0 : i32
    %c0_i32_0 = arith.constant 0 : i32
    return %arg0, %c0_i32, %arg1 : i32, i32, i32
  }
}

</mosaic_0001>

<llo_original>
// kernel: tpu_custom_call.1
$region0: #{tpu_custom_call.1}
  #allocation0 [shape = 'u32[]', space=smem, size = 0x4, offset = 0x4, fixed_abs, tag = 'smem constant byte address 0x4 - core index']
  #allocation1 [shape = 'u32[72,128]{1,0:T(1,128)}', space=vmem, size = 0x9000, scoped, tag = 'internal scratch']
  %s0 = inlined_call_operand.hbm [shape: f32[2,4,256], index: 0, kind: input, shape index: {}]
  %s1 = inlined_call_operand.vmem [shape: f32[1,4,1], index: 1, kind: input, shape index: {}]
  %s2 = inlined_call_operand.vmem [shape: f32[1,4,1], index: 2, kind: input, shape index: {}]
  %s3 = inlined_call_operand.hbm [shape: f32[2,4,256], index: 3, kind: output, shape index: {}]
  %s4 = sld [smem:[#allocation0]]
  $region49: #{tpu_custom_call.1} parent=0
    _
  %s6 = ssub.s32 1, %s4
  %s7 = scalar_select 0, %s6, %s4
  $region1: #{tpu_custom_call.1} parent=0
    #allocation2 [shape = 'u8[4096]{0}', space=vmem, size = 0x1000, scoped, tag = 'input window, operand 0']
    #allocation3 [shape = 's32[2]{0}', space=sflag, size = 0x8, scoped, tag = 'scoped memory for tpu_custom_call.1']
    #allocation4 [shape = 's32[2]{0}', space=sflag, size = 0x8, scoped, tag = 'scoped memory for tpu_custom_call.1']
    #allocation5 [shape = 'u8[4096]{0}', space=vmem, size = 0x1000, scoped, tag = 'output window, operand 0']
    %8 = vsyncpa [#allocation3], 0
    %s9 = scalar_lea.sflag [#allocation3], 1
    %10 = vsyncpa %s9, 0
    %11 = vsyncpa [#allocation4], 0
    %s12 = scalar_lea.sflag [#allocation4], 1
    %13 = vsyncpa %s12, 0
    loop: start=0, step=1, limit=6
    $region2: #{tpu_custom_call.1} parent=1 // loop_pre_header
      _
    $region3: #{tpu_custom_call.1} parent=1 // loop_header
      %s15 = sphi 0, %s19
      %p16 = scmp.ge.s32.totalorder %s15, 6
      %s22 = sphi 0, %s34
      %s23 = sphi 0, %s30
      %s24 = sphi 0, %s22
      %s25 = sphi 0, %s23
      %s26 = sphi 0, %s24
      %s27 = sphi 0, %s25
      %s39 = sphi 0, %s41
      %s42 = sphi 0, %s39
      %s43 = sphi 0, %s42
      %s59 = sphi 0, %s43
      %s63 = sphi 0, %s63
      %s65 = sphi 0, %s63
      %s66 = sphi 0, %s65
      %s80 = sphi 0, %s66
      %s84 = sphi 0, %s84
      %s86 = sphi 0, %s84
      %s87 = sphi 0, %s86
      %s101 = sphi 0, %s87
      %s109 = sphi 0, %s111
      %s112 = sphi 0, %s109
      %s113 = sphi 0, %s112
      %s129 = sphi 0, %s113
    $region4: #{tpu_custom_call.1} parent=1 // loop_header_branch
      %18 = sbr.rel (%p16) target = $region8
    $region5: #{tpu_custom_call.1} parent=1 // loop_body
      %s20 = ssub.s32 %s15, 1
      %s21 = ssub.s32 %s15, 2
      %s28 = sadd.s32 1, %s23
      %p29 = scmp.ge.s32.totalorder %s28, 2
      %s30 = scalar_select %p29, 0, %s28
      %s31 = sadd.s32 1, %s22
      %s32 = scalar_select %p29, %s31, %s22
      %p33 = scmp.ge.s32.totalorder %s32, 2
      %s34 = scalar_select %p33, 0, %s32
      %s35 = ssub.s32 %s22, %s34
      %s36 = ssub.s32 %s23, %s30
      %s37 = sor.u32 %s35, %s36
      %p38 = scmp.eq.s32.totalorder %s37, 0
      %s40 = sadd.s32 %s39, 1
      %s41 = scalar_select %p38, %s39, %s40
      %p44 = pneg %p38
      %p45 = scmp.eq.s32.totalorder %s15, 3
      %p46 = por %p44, %p45
      %p47 = scmp.ne.s32.totalorder %s39, %s42
      %p48 = scmp.eq.s32.totalorder %s15, 0
      %p49 = por %p47, %p48
      %p50 = scmp.ne.s32.totalorder %s39, %s42
      %p51 = scmp.eq.s32.totalorder %s20, 3
      %p52 = por %p50, %p51
      %p53 = scmp.ne.s32.totalorder %s42, %s43
      %p54 = scmp.eq.s32.totalorder %s20, 0
      %p55 = por %p53, %p54
      %p56 = scmp.ne.s32.totalorder %s42, %s43
      %p57 = scmp.eq.s32.totalorder %s21, 3
      %p58 = por %p56, %p57
      %p60 = scmp.ne.s32.totalorder %s43, %s59
      %p61 = scmp.eq.s32.totalorder %s21, 0
      %p62 = por %p60, %p61
      %s64 = sadd.s32 %s63, 1
      %p67 = scmp.eq.s32.totalorder %s15, 3
      %p68 = scmp.ne.s32.totalorder %s63, %s65
      %p69 = scmp.eq.s32.totalorder %s15, 0
      %p70 = por %p68, %p69
      %p71 = scmp.ne.s32.totalorder %s63, %s65
      %p72 = scmp.eq.s32.totalorder %s20, 3
      %p73 = por %p71, %p72
      %p74 = scmp.ne.s32.totalorder %s65, %s66
      %p75 = scmp.eq.s32.totalorder %s20, 0
      %p76 = por %p74, %p75
      %p77 = scmp.ne.s32.totalorder %s65, %s66
      %p78 = scmp.eq.s32.totalorder %s21, 3
      %p79 = por %p77, %p78
      %p81 = scmp.ne.s32.totalorder %s66, %s80
      %p82 = scmp.eq.s32.totalorder %s21, 0
      %p83 = por %p81, %p82
      %s85 = sadd.s32 %s84, 1
      %p88 = scmp.eq.s32.totalorder %s15, 3
      %p89 = scmp.ne.s32.totalorder %s84, %s86
      %p90 = scmp.eq.s32.totalorder %s15, 0
      %p91 = por %p89, %p90
      %p92 = scmp.ne.s32.totalorder %s84, %s86
      %p93 = scmp.eq.s32.totalorder %s20, 3
      %p94 = por %p92, %p93
      %p95 = scmp.ne.s32.totalorder %s86, %s87
      %p96 = scmp.eq.s32.totalorder %s20, 0
      %p97 = por %p95, %p96
      %p98 = scmp.ne.s32.totalorder %s86, %s87
      %p99 = scmp.eq.s32.totalorder %s21, 3
      %p100 = por %p98, %p99
      %p102 = scmp.ne.s32.totalorder %s87, %s101
      %p103 = scmp.eq.s32.totalorder %s21, 0
      %p104 = por %p102, %p103
      %s105 = ssub.s32 %s22, %s34
      %s106 = ssub.s32 %s23, %s30
      %s107 = sor.u32 %s105, %s106
      %p108 = scmp.eq.s32.totalorder %s107, 0
      %s110 = sadd.s32 %s109, 1
      %s111 = scalar_select %p108, %s109, %s110
      %p114 = pneg %p108
      %p115 = scmp.eq.s32.totalorder %s15, 3
      %p116 = por %p114, %p115
      %p117 = scmp.ne.s32.totalorder %s109, %s112
      %p118 = scmp.eq.s32.totalorder %s15, 0
      %p119 = por %p117, %p118
      %p120 = scmp.ne.s32.totalorder %s109, %s112
      %p121 = scmp.eq.s32.totalorder %s20, 3
      %p122 = por %p120, %p121
      %p123 = scmp.ne.s32.totalorder %s112, %s113
      %p124 = scmp.eq.s32.totalorder %s20, 0
      %p125 = por %p123, %p124
      %p126 = scmp.ne.s32.totalorder %s112, %s113
      %p127 = scmp.eq.s32.totalorder %s21, 3
      %p128 = por %p126, %p127
      %p130 = scmp.ne.s32.totalorder %s113, %s129
      %p131 = scmp.eq.s32.totalorder %s21, 0
      %p132 = por %p130, %p131
      %p133 = scmp.le.s32.totalorder 1, %s15
      %p134 = scmp.lt.s32.totalorder %s15, 5
      %p135 = pnand %p133, %p134
      %p136 = pneg %p135
      // Predicated region
      $region9: #{tpu_custom_call.1} parent=5 // pred_check
        _
      $region10: #{tpu_custom_call.1} parent=5 // pred_check_branch
        %138 = sbr.rel (%p135) target = $region12
      $region11: #{tpu_custom_call.1} parent=5 // pred_region
        %s139 = ssub.s32 %s15, 1
        // Predicated region
        $region13: #{tpu_custom_call.1} parent=11 // pred_check
          %p140 = pneg %p76
        $region14: #{tpu_custom_call.1} parent=11 // pred_check_branch
          %142 = sbr.rel (%p140) target = $region16
        $region15: #{tpu_custom_call.1} parent=11 // pred_region
          _
        $region16: #{tpu_custom_call.1} parent=11 // pred_fallthru
          _
        // Predicated region
        $region17: #{tpu_custom_call.1} parent=11 // pred_check
          %p143 = pneg %p97
        $region18: #{tpu_custom_call.1} parent=11 // pred_check_branch
          %145 = sbr.rel (%p143) target = $region20
        $region19: #{tpu_custom_call.1} parent=11 // pred_region
          _
        $region20: #{tpu_custom_call.1} parent=11 // pred_fallthru
          _
      $region12: #{tpu_custom_call.1} parent=5 // pred_fallthru
        _
      %p146 = scmp.lt.s32.totalorder %s15, 4
      // Predicated region
      $region21: #{tpu_custom_call.1} parent=5 // pred_check
        %p147 = pneg %p146
      $region22: #{tpu_custom_call.1} parent=5 // pred_check_branch
        %149 = sbr.rel (%p147) target = $region24
      $region23: #{tpu_custom_call.1} parent=5 // pred_region
        // Predicated region
        $region25: #{tpu_custom_call.1} parent=23 // pred_check
          %p150 = pneg %p49
        $region26: #{tpu_custom_call.1} parent=23 // pred_check_branch
          %152 = sbr.rel (%p150) target = $region28
        $region27: #{tpu_custom_call.1} parent=23 // pred_region
          %s153 = sand.u32 %s39, 1
          %s154 = scalar_lea.sflag [#allocation3], %s153
          %s155 = sand.u32 %s39, 1
          %s156 = smul.addr %s155, 4
          %s157 = scalar_lea.vmem [#allocation2], %s156
          %159 = vsyncadd %s154, 0
          %s160 = smul.addr %s22, 2
          %s161 = sadd.s32 %s23, %s160
          %s162 = smul.addr %s161, 4
          %s163 = scalar_lea.hbm %s0, %s162
          %s165 = sshll.u32 %s163, 4
          %s166 = int_to_ptr.hbm [resolvable:$true] %s165
          %s167 = sshll.u32 %s157, 4
          %s168 = int_to_ptr.vmem [resolvable:$true] %s167
          %170 = dma.hbm_to_vmem [thread:$0]  %s166, 64, %s168, %s154
        $region28: #{tpu_custom_call.1} parent=23 // pred_fallthru
          _
      $region24: #{tpu_custom_call.1} parent=5 // pred_fallthru
        _
      %p171 = scmp.le.s32.totalorder 1, %s15
      %p172 = scmp.lt.s32.totalorder %s15, 5
      %p173 = pnand %p171, %p172
      %p174 = pneg %p173
      // Predicated region
      $region29: #{tpu_custom_call.1} parent=5 // pred_check
        _
      $region30: #{tpu_custom_call.1} parent=5 // pred_check_branch
        %176 = sbr.rel (%p173) target = $region32
      $region31: #{tpu_custom_call.1} parent=5 // pred_region
        %s177 = ssub.s32 %s15, 1
        %s178 = sand.u32 %s42, 1
        %s179 = scalar_lea.sflag [#allocation3], %s178
        %s180 = sand.u32 %s42, 1
        %s181 = smul.addr %s180, 4
        %s182 = scalar_lea.vmem [#allocation2], %s181
        // Predicated region
        $region33: #{tpu_custom_call.1} parent=31 // pred_check
          %p183 = pneg %p55
        $region34: #{tpu_custom_call.1} parent=31 // pred_check_branch
          %185 = sbr.rel (%p183) target = $region36
        $region35: #{tpu_custom_call.1} parent=31 // pred_region
          %187 = dma.done %s179, 64
        $region36: #{tpu_custom_call.1} parent=31 // pred_fallthru
          _
        %s188 = sand.u32 %s42, 1
        %s189 = scalar_lea.sflag [#allocation3], %s188
        %s190 = sand.u32 %s42, 1
        %s191 = smul.addr %s190, 4
        %s192 = scalar_lea.vmem [#allocation2], %s191
        %p193 = pneg %p55
        %p194 = pneg %p52
        %p195 = pneg %p76
        %p196 = pneg %p73
        %p197 = pneg %p97
        %p198 = pneg %p94
        %p199 = pneg %p125
        %p200 = pneg %p122
        %s201 = sand.u32 %s112, 1
        %s202 = scalar_lea.sflag [#allocation4], %s201
        %s203 = sand.u32 %s112, 1
        %s204 = smul.addr %s203, 4
        %s205 = scalar_lea.vmem [#allocation5], %s204
        %v206 = vld [vmem:[%s182] sm:$0xf]
        %vm207 = vcmask 1043456
        %v208 = vsel %vm207, %v206, 0.0
        %v209 = vrot.slane %v208, 4
        %v210 = vadd.f32 %v208, %v209
        %v211 = vrot.slane %v210, 2
        %v212 = vadd.f32 %v210, %v211
        %v213 = vrot.slane %v212, 1
        %v214 = vadd.f32 %v212, %v213
        %v215 = vrcp.pop 4.0
        %v216 = vmul.f32 4.0, %v215
        %v217 = vsub.f32 1.0, %v216
        %v218 = vmul.f32 %v215, %v217
        %v219 = vadd.f32 %v215, %v218
        %vm220 = vweird.f32 %v215
        %v221 = vsel %vm220, %v215, %v219
        %v222 = vmul.f32 %v214, %v221
        %v223 = vmul.f32 %v206, %v206
        %v224 = vsel %vm207, %v223, 0.0
        %v225 = vrot.slane %v224, 4
        %v226 = vadd.f32 %v224, %v225
        %v227 = vrot.slane %v226, 2
        %v228 = vadd.f32 %v226, %v227
        %v229 = vrot.slane %v228, 1
        %v230 = vadd.f32 %v228, %v229
        %v231 = vmul.f32 %v230, %v221
        %v232 = vmul.f32 %v222, %v222
        %v233 = vsub.f32 %v231, %v232
        %v234 = vmax.f32 %v233, 0.0
        %v235 = vadd.f32 %v234, 1e-06
        %v236 = vrsqrt.pop %v235
        %v237 = vmul.f32 %v236, %v235
        %v238 = vmul.f32 %v237, %v236
        %v239 = vmul.f32 0.5, %v238
        %v240 = vsub.f32 1.5, %v239
        %v241 = vmul.f32 %v236, %v240
        %vm242 = vweird.f32 %v235
        %vm243 = vweird.f32 %v236
        %vm244 = vmor %vm242, %vm243
        %v245 = vsel %vm244, %v236, %v241
        %v246 = vld [vmem:[%s1] sm:$0xf]
        %v247 = vld [vmem:[%s2] sm:$0xf]
        %v248 = vsub.f32 %v206, %v222
        %v249 = vmul.f32 %v248, %v245
        %251 = vset.pattern.permute.xlu0 0
        %252 = vperm.xlu0 %251, %v246
        %v253 = vpop.permute.xlu0 %252
        %v255 = vmul.f32 %v249, %v253
        %257 = vset.pattern.permute.xlu0 0
        %258 = vperm.xlu0 %257, %v247
        %v259 = vpop.permute.xlu0 %258
        %v261 = vadd.f32 %v255, %v259
        %262 = vst [vmem:[%s205] sm:$0xf] %v261
        %s263 = sand.u32 %s112, 1
        %s264 = scalar_lea.sflag [#allocation4], %s263
        %s265 = sand.u32 %s112, 1
        %s266 = smul.addr %s265, 4
        %s267 = scalar_lea.vmem [#allocation5], %s266
        // Predicated region
        $region37: #{tpu_custom_call.1} parent=31 // pred_check
          %p268 = pneg %p122
        $region38: #{tpu_custom_call.1} parent=31 // pred_check_branch
          %270 = sbr.rel (%p268) target = $region40
        $region39: #{tpu_custom_call.1} parent=31 // pred_region
          %272 = vsyncadd %s264, 0
          %s273 = smul.addr %s24, 2
          %s274 = sadd.s32 %s25, %s273
          %s275 = smul.addr %s274, 4
          %s276 = scalar_lea.hbm %s3, %s275
          %s278 = sshll.u32 %s267, 4
          %s279 = int_to_ptr.vmem [resolvable:$true] %s278
          %s280 = sshll.u32 %s276, 4
          %s281 = int_to_ptr.hbm [resolvable:$true] %s280
          %283 = dma.vmem_to_hbm [thread:$0]  %s279, 64, %s281, %s264
        $region40: #{tpu_custom_call.1} parent=31 // pred_fallthru
          _
      $region32: #{tpu_custom_call.1} parent=5 // pred_fallthru
        _
      %p284 = scmp.le.s32.totalorder 2, %s15
      // Predicated region
      $region41: #{tpu_custom_call.1} parent=5 // pred_check
        %p285 = pneg %p284
      $region42: #{tpu_custom_call.1} parent=5 // pred_check_branch
        %287 = sbr.rel (%p285) target = $region44
      $region43: #{tpu_custom_call.1} parent=5 // pred_region
        %s288 = ssub.s32 %s15, 2
        // Predicated region
        $region45: #{tpu_custom_call.1} parent=43 // pred_check
          %p289 = pneg %p128
        $region46: #{tpu_custom_call.1} parent=43 // pred_check_branch
          %291 = sbr.rel (%p289) target = $region48
        $region47: #{tpu_custom_call.1} parent=43 // pred_region
          %s292 = sand.u32 %s113, 1
          %s293 = scalar_lea.sflag [#allocation4], %s292
          %s294 = sand.u32 %s113, 1
          %s295 = smul.addr %s294, 4
          %s296 = scalar_lea.vmem [#allocation5], %s295
          %298 = dma.done %s293, 64
        $region48: #{tpu_custom_call.1} parent=43 // pred_fallthru
          _
      $region44: #{tpu_custom_call.1} parent=5 // pred_fallthru
        _
    $region6: #{tpu_custom_call.1} parent=1 // loop_footer
      %s19 = sadd.s32 1, %s15
    $region7: #{tpu_custom_call.1} parent=1 // loop_footer_branch
      %14 = sbr.rel target = $region3
    $region8: #{tpu_custom_call.1} parent=1 // loop_exit
      _
    %299 = vsyncpa [#allocation3], 1
    %s300 = scalar_lea.sflag [#allocation3], 1
    %301 = vsyncpa %s300, 1
    %302 = vsyncpa [#allocation4], 1
    %s303 = scalar_lea.sflag [#allocation4], 1
    %304 = vsyncpa %s303, 1

</llo_original>
